<compile_context>
chip_gen: v5e
topology: v5e:2x2
jax: 0.10.0
libtpu: 0.0.40
codegen_flags: <defaults>
</compile_context>

<pallas_src>
import jax
import jax.numpy as jnp
from jax import lax
from jax.experimental import pallas as pl
from jax.experimental.pallas import tpu as pltpu

EPS = 1e-5
VMEM_LIMIT = 32 * 1024 * 1024  # safe on v5e/v6e/v7x; per-step working set is << this


def _largest_divisor_within(n: int, cap: int) -> int:
    """Largest divisor of n that is <= cap (>= 1)."""
    cap = max(1, min(n, cap))
    for d in range(cap, 0, -1):
        if n % d == 0:
            return d
    return 1


# ----------------------------------------------------------------------------
# Kernel 1: im2col GEMM (cat(x,x) residual folded into the weights) + bias,
#           channel-major lane-dense (Co, HW) tiles, per-block BN partial sums.
# ----------------------------------------------------------------------------
def conv5_res_stats_kernel(p_ref, w_ref, b_ref, y_ref, s1_ref, s2_ref):
    # p_ref : (Bn, 25*C, H*W) f32   im2col patches (K on sublanes, HW lane-dense)
    # w_ref : (Co, 25*C)      f32   conv weights, residual identity folded in
    # b_ref : (Co, 1)         f32
    # y_ref : (Bn, Co, H*W)   bf16  conv + residual + bias (pre-BN)
    # s1/s2 : (Co, 1)         f32   per-block sum / sum-of-squares partials
    Bn = p_ref.shape[0]
    w = w_ref[...]
    b = b_ref[...]
    s1 = jnp.zeros(s1_ref.shape, jnp.float32)
    s2 = jnp.zeros(s2_ref.shape, jnp.float32)
    for i in range(Bn):  # static unroll; each dot result (Co, HW) is lane-dense
        y = jnp.dot(w, p_ref[i], preferred_element_type=jnp.float32) + b  # (Co, HW)
        y_ref[i] = y.astype(y_ref.dtype)
        # BN partials from the f32 accumulator (before the bf16 downcast).
        s1 = s1 + jnp.sum(y, axis=1, keepdims=True)
        s2 = s2 + jnp.sum(y * y, axis=1, keepdims=True)
    s1_ref[...] = s1
    s2_ref[...] = s2


# ----------------------------------------------------------------------------
# Kernel 2: y * scale + shift, ReLU (scale/shift precomputed from global stats).
# ----------------------------------------------------------------------------
def bn_relu_kernel(y_ref, scale_ref, shift_ref, o_ref):
    # y_ref: (Bn2, Co, H*W) bf16 ; scale/shift: (Co, 1) f32 ; o_ref: (Bn2, Co, H*W)
    y = y_ref[...].astype(jnp.float32)
    o_ref[...] = jnp.maximum(
        y * scale_ref[...] + shift_ref[...], 0.0
    ).astype(o_ref.dtype)


# ----------------------------------------------------------------------------
# Wrapper
# ----------------------------------------------------------------------------
def resconv5(x_nchw, weight_oihw, bias, gamma, beta, *, eps=EPS):
    """Forward of ResConv5 (training-mode BN). x: (N,C,H,W); weight: (2C,C,5,5)."""
    N, C, H, W = x_nchw.shape
    Co = weight_oihw.shape[0]          # 2C
    HW = H * W
    KC = 25 * C

    xf = x_nchw.astype(jnp.float32)

    # im2col hoisted to the wrapper (one fused XLA op).  Output feature ordering
    # is channel-major (c, ky, kx) with kx fastest -> exactly OIHW-flat order.
    patches = lax.conv_general_dilated_patches(
        xf, filter_shape=(5, 5), window_strides=(1, 1),
        padding=((2, 2), (2, 2)),
        dimension_numbers=("NCHW", "OIHW", "NCHW"))            # (N, 25C, H, W)
    patches = patches.reshape(N, KC, HW)

    # OIHW (Co, C, 5, 5) -> (Co, 25C); fold cat(x, x): output channel j also
    # receives +x[j % C] at the centre tap (ky, kx) = (2, 2) -> column j%C*25+12.
    w2 = weight_oihw.astype(jnp.float32).reshape(Co, KC)
    rows = jnp.arange(Co)
    cols = (rows % C) * 25 + 2 * 5 + 2
    w2 = w2.at[rows, cols].add(1.0)

    b_col = bias.astype(jnp.float32).reshape(Co, 1)

    # ---- pass 1: conv + residual + bias, per-block BN partials ---------------
    # Batch Bn images per grid step; keep the per-step patch block <= ~4 MiB.
    per_img = KC * HW * 4
    Bn = _largest_divisor_within(N, max(1, (4 << 20) // per_img))
    G = N // Bn

    y, s1, s2 = pl.pallas_call(
        conv5_res_stats_kernel,
        grid=(G,),
        in_specs=[
            pl.BlockSpec((Bn, KC, HW), lambda g: (g, 0, 0)),
            pl.BlockSpec((Co, KC), lambda g: (0, 0)),
            pl.BlockSpec((Co, 1), lambda g: (0, 0)),
        ],
        out_specs=(
            pl.BlockSpec((Bn, Co, HW), lambda g: (g, 0, 0)),
            pl.BlockSpec((None, Co, 1), lambda g: (g, 0, 0)),
            pl.BlockSpec((None, Co, 1), lambda g: (g, 0, 0)),
        ),
        out_shape=(
            jax.ShapeDtypeStruct((N, Co, HW), jnp.bfloat16),
            jax.ShapeDtypeStruct((G, Co, 1), jnp.float32),
            jax.ShapeDtypeStruct((G, Co, 1), jnp.float32),
        ),
        compiler_params=pltpu.CompilerParams(
            dimension_semantics=("parallel",),
            vmem_limit_bytes=VMEM_LIMIT),
        cost_estimate=pl.CostEstimate(
            flops=2 * N * HW * KC * Co,
            transcendentals=0,
            bytes_accessed=(N * KC * HW * 4 + Co * KC * 4
                            + N * Co * HW * 2 + 2 * G * Co * 4)),
    )(patches, w2, b_col)

    # ---- finalize global batch statistics (tiny: Co values, f32) -------------
    count = jnp.float32(N * HW)
    mean = jnp.sum(s1, axis=0) / count                     # (Co, 1)
    var = jnp.maximum(jnp.sum(s2, axis=0) / count - mean * mean, 0.0)
    inv = lax.rsqrt(var + eps)
    scale = gamma.astype(jnp.float32).reshape(Co, 1) * inv
    shift = beta.astype(jnp.float32).reshape(Co, 1) - mean * scale

    # ---- pass 2: normalize + ReLU (mem-bound; use large multi-image blocks) --
    per_img2 = Co * HW * (2 + 4)       # bf16 read + f32 write
    Bn2 = _largest_divisor_within(N, max(1, (8 << 20) // per_img2))
    G2 = N // Bn2

    out = pl.pallas_call(
        bn_relu_kernel,
        grid=(G2,),
        in_specs=[
            pl.BlockSpec((Bn2, Co, HW), lambda g: (g, 0, 0)),
            pl.BlockSpec((Co, 1), lambda g: (0, 0)),
            pl.BlockSpec((Co, 1), lambda g: (0, 0)),
        ],
        out_specs=pl.BlockSpec((Bn2, Co, HW), lambda g: (g, 0, 0)),
        out_shape=jax.ShapeDtypeStruct((N, Co, HW), x_nchw.dtype),
        compiler_params=pltpu.CompilerParams(
            dimension_semantics=("parallel",),
            vmem_limit_bytes=VMEM_LIMIT),
        cost_estimate=pl.CostEstimate(
            flops=3 * N * Co * HW,
            transcendentals=0,
            bytes_accessed=N * Co * HW * (2 + 4)),
    )(y, scale, shift)

    # (N, Co, H*W) is already channel-major; reshape (free) back to NCHW.
    return out.reshape(N, Co, H, W)


# ----------------------------------------------------------------------------
# Pure-JAX f32 reference (mirrors the PyTorch ResConv5 in training mode).
# ----------------------------------------------------------------------------
def ref_forward(x, weight, bias, gamma, beta, eps=EPS):
    conv = lax.conv_general_dilated(
        x, weight, window_strides=(1, 1), padding=((2, 2), (2, 2)),
        dimension_numbers=("NCHW", "OIHW", "NCHW"))
    conv = conv + bias[None, :, None, None]
    y = conv + jnp.concatenate([x, x], axis=1)
    mean = jnp.mean(y, axis=(0, 2, 3), keepdims=True)
    var = jnp.mean((y - mean) ** 2, axis=(0, 2, 3), keepdims=True)
    yn = (y - mean) * lax.rsqrt(var + eps) \
         * gamma[None, :, None, None] + beta[None, :, None, None]
    return jnp.maximum(yn, 0.0)


if __name__ == "__main__":
    key = jax.random.PRNGKey(0)
    # ResConv5(16): in_channels=16, out_channels=32, 5x5, padding=2 (small spatial).
    N, C, H, W = 2, 16, 16, 16
    Co = 2 * C

    k1, k2, k3, k4, k5 = jax.random.split(key, 5)
    x = jax.random.normal(k1, (N, C, H, W), jnp.float32)

    fan_in = C * 5 * 5
    bound = 1.0 / (fan_in ** 0.5)
    weight = jax.random.uniform(k2, (Co, C, 5, 5), jnp.float32, -bound, bound)
    bias = jax.random.uniform(k3, (Co,), jnp.float32, -bound, bound)
    gamma = jax.random.uniform(k4, (Co,), jnp.float32, 0.5, 1.5)
    beta = 0.1 * jax.random.normal(k5, (Co,), jnp.float32)

    out = jax.jit(resconv5)(x, weight, bias, gamma, beta)
    jax.block_until_ready(out)

    out_ref = ref_forward(x, weight, bias, gamma, beta)
    max_err = float(jnp.max(jnp.abs(out - out_ref)))
    # All matmul/stats math is f32; the only reduced precision is the bf16
    # round-trip of the pre-BN intermediate (expected max deviation ~1e-2).
    assert max_err < 5e-2, f"mismatch vs reference: {max_err}"

    print("KERNEL_OK")
</pallas_src>

<mosaic_0001>
module attributes {stable_mosaic.version = 11 : i64} {
  func.func @conv5_res_stats_kernel(%arg0: i32, %arg1: memref<2x400x256xf32, #tpu.memory_space<vmem>>, %arg2: memref<32x400xf32, #tpu.memory_space<vmem>>, %arg3: memref<32x1xf32, #tpu.memory_space<vmem>>, %arg4: memref<2x32x256xbf16, #tpu.memory_space<vmem>>, %arg5: memref<1x32x1xf32, #tpu.memory_space<vmem>>, %arg6: memref<1x32x1xf32, #tpu.memory_space<vmem>>) attributes {dimension_semantics = [#tpu.dimension_semantics<parallel>], iteration_bounds = array<i64: 1>, scalar_prefetch = 0 : i64, scratch_operands = 0 : i64, tpu.core_type = #tpu.core_type<tc>, window_params = [{transform_indices = @transform_0, window_bounds = array<i64: 2, 400, 256>}, {pipeline_mode = #tpu.pipeline_mode<synchronous>, transform_indices = @transform_1, window_bounds = array<i64: 32, 400>}, {pipeline_mode = #tpu.pipeline_mode<synchronous>, transform_indices = @transform_2, window_bounds = array<i64: 32, 1>}, {transform_indices = @transform_3, window_bounds = array<i64: 2, 32, 256>}, {transform_indices = @transform_4, window_bounds = array<i64: 1, 32, 1>}, {transform_indices = @transform_5, window_bounds = array<i64: 1, 32, 1>}]} {
    %c0 = arith.constant 0 : index
    %c0_0 = arith.constant 0 : index
    %0 = vector.load %arg2[%c0, %c0_0] : memref<32x400xf32, #tpu.memory_space<vmem>>, vector<32x400xf32>
    %c0_1 = arith.constant 0 : index
    %c0_2 = arith.constant 0 : index
    %1 = vector.load %arg3[%c0_1, %c0_2] : memref<32x1xf32, #tpu.memory_space<vmem>>, vector<32x1xf32>
    %cst = arith.constant 0.000000e+00 : f32
    %2 = vector.broadcast %cst : f32 to vector<32x1xf32>
    %cst_3 = arith.constant 0.000000e+00 : f32
    %3 = vector.broadcast %cst_3 : f32 to vector<32x1xf32>
    %c0_4 = arith.constant 0 : index
    %c0_5 = arith.constant 0 : index
    %c0_6 = arith.constant 0 : index
    %4 = vector.load %arg1[%c0_4, %c0_5, %c0_6] : memref<2x400x256xf32, #tpu.memory_space<vmem>>, vector<1x400x256xf32>
    %5 = vector.shape_cast %4 : vector<1x400x256xf32> to vector<400x256xf32>
    %cst_7 = arith.constant dense<0.000000e+00> : vector<32x256xf32>
    %6 = tpu.matmul %0, %5, %cst_7 {dimension_numbers = #tpu.dot_dimension_numbers<[1], [0], [0], [1], [0, 0, 1, 1], [], []>} : vector<32x400xf32>, vector<400x256xf32>, vector<32x256xf32> -> vector<32x256xf32>
    %7 = vector.broadcast %1 : vector<32x1xf32> to vector<32x256xf32>
    %8 = arith.addf %6, %7 : vector<32x256xf32>
    %9 = arith.truncf %8 : vector<32x256xf32> to vector<32x256xbf16>
    %c0_8 = arith.constant 0 : index
    %c0_9 = arith.constant 0 : index
    %c0_10 = arith.constant 0 : index
    %10 = vector.load %arg4[%c0_8, %c0_9, %c0_10] : memref<2x32x256xbf16, #tpu.memory_space<vmem>>, vector<1x32x256xbf16>
    %11 = vector.shape_cast %10 : vector<1x32x256xbf16> to vector<32x256xbf16>
    %12 = vector.shape_cast %9 : vector<32x256xbf16> to vector<1x32x256xbf16>
    tpu.vector_store %arg4[%c0_8, %c0_9, %c0_10], %12 {strides = array<i32>} : memref<2x32x256xbf16, #tpu.memory_space<vmem>>, vector<1x32x256xbf16>,
    %cst_11 = arith.constant dense<0.000000e+00> : vector<32xf32>
    %13 = vector.multi_reduction <add>, %8, %cst_11 [1] : vector<32x256xf32> to vector<32xf32>
    %14 = vector.shape_cast %13 : vector<32xf32> to vector<32x1xf32>
    %15 = arith.addf %2, %14 : vector<32x1xf32>
    %16 = arith.mulf %8, %8 : vector<32x256xf32>
    %cst_12 = arith.constant dense<0.000000e+00> : vector<32xf32>
    %17 = vector.multi_reduction <add>, %16, %cst_12 [1] : vector<32x256xf32> to vector<32xf32>
    %18 = vector.shape_cast %17 : vector<32xf32> to vector<32x1xf32>
    %19 = arith.addf %3, %18 : vector<32x1xf32>
    %c1 = arith.constant 1 : index
    %c0_13 = arith.constant 0 : index
    %c0_14 = arith.constant 0 : index
    %20 = vector.load %arg1[%c1, %c0_13, %c0_14] : memref<2x400x256xf32, #tpu.memory_space<vmem>>, vector<1x400x256xf32>
    %21 = vector.shape_cast %20 : vector<1x400x256xf32> to vector<400x256xf32>
    %cst_15 = arith.constant dense<0.000000e+00> : vector<32x256xf32>
    %22 = tpu.matmul %0, %21, %cst_15 {dimension_numbers = #tpu.dot_dimension_numbers<[1], [0], [0], [1], [0, 0, 1, 1], [], []>} : vector<32x400xf32>, vector<400x256xf32>, vector<32x256xf32> -> vector<32x256xf32>
    %23 = vector.broadcast %1 : vector<32x1xf32> to vector<32x256xf32>
    %24 = arith.addf %22, %23 : vector<32x256xf32>
    %25 = arith.truncf %24 : vector<32x256xf32> to vector<32x256xbf16>
    %c1_16 = arith.constant 1 : index
    %c0_17 = arith.constant 0 : index
    %c0_18 = arith.constant 0 : index
    %26 = vector.load %arg4[%c1_16, %c0_17, %c0_18] : memref<2x32x256xbf16, #tpu.memory_space<vmem>>, vector<1x32x256xbf16>
    %27 = vector.shape_cast %26 : vector<1x32x256xbf16> to vector<32x256xbf16>
    %28 = vector.shape_cast %25 : vector<32x256xbf16> to vector<1x32x256xbf16>
    tpu.vector_store %arg4[%c1_16, %c0_17, %c0_18], %28 {strides = array<i32>} : memref<2x32x256xbf16, #tpu.memory_space<vmem>>, vector<1x32x256xbf16>,
    %cst_19 = arith.constant dense<0.000000e+00> : vector<32xf32>
    %29 = vector.multi_reduction <add>, %24, %cst_19 [1] : vector<32x256xf32> to vector<32xf32>
    %30 = vector.shape_cast %29 : vector<32xf32> to vector<32x1xf32>
    %31 = arith.addf %15, %30 : vector<32x1xf32>
    %32 = arith.mulf %24, %24 : vector<32x256xf32>
    %cst_20 = arith.constant dense<0.000000e+00> : vector<32xf32>
    %33 = vector.multi_reduction <add>, %32, %cst_20 [1] : vector<32x256xf32> to vector<32xf32>
    %34 = vector.shape_cast %33 : vector<32xf32> to vector<32x1xf32>
    %35 = arith.addf %19, %34 : vector<32x1xf32>
    %c0_21 = arith.constant 0 : index
    %c0_22 = arith.constant 0 : index
    %c0_23 = arith.constant 0 : index
    %36 = vector.load %arg5[%c0_21, %c0_22, %c0_23] : memref<1x32x1xf32, #tpu.memory_space<vmem>>, vector<1x32x1xf32>
    %37 = vector.shape_cast %36 : vector<1x32x1xf32> to vector<32x1xf32>
    %38 = vector.shape_cast %31 : vector<32x1xf32> to vector<1x32x1xf32>
    tpu.vector_store %arg5[%c0_21, %c0_22, %c0_23], %38 {strides = array<i32>} : memref<1x32x1xf32, #tpu.memory_space<vmem>>, vector<1x32x1xf32>,
    %c0_24 = arith.constant 0 : index
    %c0_25 = arith.constant 0 : index
    %c0_26 = arith.constant 0 : index
    %39 = vector.load %arg6[%c0_24, %c0_25, %c0_26] : memref<1x32x1xf32, #tpu.memory_space<vmem>>, vector<1x32x1xf32>
    %40 = vector.shape_cast %39 : vector<1x32x1xf32> to vector<32x1xf32>
    %41 = vector.shape_cast %35 : vector<32x1xf32> to vector<1x32x1xf32>
    tpu.vector_store %arg6[%c0_24, %c0_25, %c0_26], %41 {strides = array<i32>} : memref<1x32x1xf32, #tpu.memory_space<vmem>>, vector<1x32x1xf32>,
    return
  }
  func.func @transform_0(%arg0: i32) -> (i32, i32, i32) {
    %c0_i32 = arith.constant 0 : i32
    %c0_i32_0 = arith.constant 0 : i32
    %c0_i32_1 = arith.constant 0 : i32
    return %arg0, %c0_i32, %c0_i32_0 : i32, i32, i32
  }
  func.func @transform_1(%arg0: i32) -> (i32, i32) {
    %c0_i32 = arith.constant 0 : i32
    %c0_i32_0 = arith.constant 0 : i32
    %c0_i32_1 = arith.constant 0 : i32
    return %c0_i32, %c0_i32_0 : i32, i32
  }
  func.func @transform_2(%arg0: i32) -> (i32, i32) {
    %c0_i32 = arith.constant 0 : i32
    %c0_i32_0 = arith.constant 0 : i32
    %c0_i32_1 = arith.constant 0 : i32
    return %c0_i32, %c0_i32_0 : i32, i32
  }
  func.func @transform_3(%arg0: i32) -> (i32, i32, i32) {
    %c0_i32 = arith.constant 0 : i32
    %c0_i32_0 = arith.constant 0 : i32
    %c0_i32_1 = arith.constant 0 : i32
    return %arg0, %c0_i32, %c0_i32_0 : i32, i32, i32
  }
  func.func @transform_4(%arg0: i32) -> (i32, i32, i32) {
    %c0_i32 = arith.constant 0 : i32
    %c0_i32_0 = arith.constant 0 : i32
    %c0_i32_1 = arith.constant 0 : i32
    return %arg0, %c0_i32, %c0_i32_0 : i32, i32, i32
  }
  func.func @transform_5(%arg0: i32) -> (i32, i32, i32) {
    %c0_i32 = arith.constant 0 : i32
    %c0_i32_0 = arith.constant 0 : i32
    %c0_i32_1 = arith.constant 0 : i32
    return %arg0, %c0_i32, %c0_i32_0 : i32, i32, i32
  }
}

module attributes {stable_mosaic.version = 11 : i64} {
  func.func @bn_relu_kernel(%arg0: i32, %arg1: memref<2x32x256xbf16, #tpu.memory_space<vmem>>, %arg2: memref<32x1xf32, #tpu.memory_space<vmem>>, %arg3: memref<32x1xf32, #tpu.memory_space<vmem>>, %arg4: memref<2x32x256xf32, #tpu.memory_space<vmem>>) attributes {dimension_semantics = [#tpu.dimension_semantics<parallel>], iteration_bounds = array<i64: 1>, scalar_prefetch = 0 : i64, scratch_operands = 0 : i64, tpu.core_type = #tpu.core_type<tc>, window_params = [{transform_indices = @transform_0, window_bounds = array<i64: 2, 32, 256>}, {pipeline_mode = #tpu.pipeline_mode<synchronous>, transform_indices = @transform_1, window_bounds = array<i64: 32, 1>}, {pipeline_mode = #tpu.pipeline_mode<synchronous>, transform_indices = @transform_2, window_bounds = array<i64: 32, 1>}, {transform_indices = @transform_3, window_bounds = array<i64: 2, 32, 256>}]} {
    %c0 = arith.constant 0 : index
    %c0_0 = arith.constant 0 : index
    %c0_1 = arith.constant 0 : index
    %0 = vector.load %arg1[%c0, %c0_0, %c0_1] : memref<2x32x256xbf16, #tpu.memory_space<vmem>>, vector<2x32x256xbf16>
    %1 = arith.extf %0 : vector<2x32x256xbf16> to vector<2x32x256xf32>
    %c0_2 = arith.constant 0 : index
    %c0_3 = arith.constant 0 : index
    %2 = vector.load %arg2[%c0_2, %c0_3] : memref<32x1xf32, #tpu.memory_space<vmem>>, vector<32x1xf32>
    %3 = vector.shape_cast %2 : vector<32x1xf32> to vector<1x32x1xf32>
    %4 = vector.broadcast %3 : vector<1x32x1xf32> to vector<2x32x256xf32>
    %5 = arith.mulf %1, %4 : vector<2x32x256xf32>
    %c0_4 = arith.constant 0 : index
    %c0_5 = arith.constant 0 : index
    %6 = vector.load %arg3[%c0_4, %c0_5] : memref<32x1xf32, #tpu.memory_space<vmem>>, vector<32x1xf32>
    %7 = vector.shape_cast %6 : vector<32x1xf32> to vector<1x32x1xf32>
    %8 = vector.broadcast %7 : vector<1x32x1xf32> to vector<2x32x256xf32>
    %9 = arith.addf %5, %8 : vector<2x32x256xf32>
    %cst = arith.constant 0.000000e+00 : f32
    %10 = vector.broadcast %cst : f32 to vector<2x32x256xf32>
    %11 = arith.maximumf %9, %10 : vector<2x32x256xf32>
    %c0_6 = arith.constant 0 : index
    %c0_7 = arith.constant 0 : index
    %c0_8 = arith.constant 0 : index
    %12 = vector.load %arg4[%c0_6, %c0_7, %c0_8] : memref<2x32x256xf32, #tpu.memory_space<vmem>>, vector<2x32x256xf32>
    tpu.vector_store %arg4[%c0_6, %c0_7, %c0_8], %11 {strides = array<i32>} : memref<2x32x256xf32, #tpu.memory_space<vmem>>, vector<2x32x256xf32>,
    return
  }
  func.func @transform_0(%arg0: i32) -> (i32, i32, i32) {
    %c0_i32 = arith.constant 0 : i32
    %c0_i32_0 = arith.constant 0 : i32
    %c0_i32_1 = arith.constant 0 : i32
    return %arg0, %c0_i32, %c0_i32_0 : i32, i32, i32
  }
  func.func @transform_1(%arg0: i32) -> (i32, i32) {
    %c0_i32 = arith.constant 0 : i32
    %c0_i32_0 = arith.constant 0 : i32
    %c0_i32_1 = arith.constant 0 : i32
    return %c0_i32, %c0_i32_0 : i32, i32
  }
  func.func @transform_2(%arg0: i32) -> (i32, i32) {
    %c0_i32 = arith.constant 0 : i32
    %c0_i32_0 = arith.constant 0 : i32
    %c0_i32_1 = arith.constant 0 : i32
    return %c0_i32, %c0_i32_0 : i32, i32
  }
  func.func @transform_3(%arg0: i32) -> (i32, i32, i32) {
    %c0_i32 = arith.constant 0 : i32
    %c0_i32_0 = arith.constant 0 : i32
    %c0_i32_1 = arith.constant 0 : i32
    return %arg0, %c0_i32, %c0_i32_0 : i32, i32, i32
  }
}

</mosaic_0001>

<llo_original>
// kernel: resconv5.3
$region0: #{resconv5.3}
  #allocation0 [shape = 'u32[]', space=smem, size = 0x4, offset = 0x4, fixed_abs, tag = 'smem constant byte address 0x4 - core index']
  #allocation1 [shape = 'u32[72,128]{1,0:T(1,128)}', space=vmem, size = 0x9000, scoped, tag = 'internal scratch']
  %s0 = inlined_call_operand.vmem [shape: bf16[2,32,256], index: 0, kind: input, shape index: {}]
  %s1 = inlined_call_operand.vmem [shape: f32[32,1], index: 1, kind: input, shape index: {}]
  %s2 = inlined_call_operand.vmem [shape: f32[32,1], index: 2, kind: input, shape index: {}]
  %s3 = inlined_call_operand.vmem [shape: f32[2,32,256], index: 3, kind: output, shape index: {}]
  %s4 = sld [smem:[#allocation0]]
  $region22: #{resconv5.3} parent=0
    _
  %s6 = ssub.s32 1, %s4
  %s7 = scalar_select 0, %s6, %s4
  // Predicated region
  $region2: #{resconv5.3} parent=0 // pred_check
    _
  $region3: #{resconv5.3} parent=0 // pred_check_branch
    %9 = sbr.rel (0) target = $region5
  $region4: #{resconv5.3} parent=0 // pred_region
    _
  $region5: #{resconv5.3} parent=0 // pred_fallthru
    _
  // Predicated region
  $region6: #{resconv5.3} parent=0 // pred_check
    _
  $region7: #{resconv5.3} parent=0 // pred_check_branch
    %11 = sbr.rel (0) target = $region9
  $region8: #{resconv5.3} parent=0 // pred_region
    _
  $region9: #{resconv5.3} parent=0 // pred_fallthru
    _
  // Predicated region
  $region10: #{resconv5.3} parent=0 // pred_check
    _
  $region11: #{resconv5.3} parent=0 // pred_check_branch
    %13 = sbr.rel (0) target = $region13
  $region12: #{resconv5.3} parent=0 // pred_region
    _
  $region13: #{resconv5.3} parent=0 // pred_fallthru
    _
  %v14 = vld [vmem:[%s0] sm:$0xff]
  %v15 = vld [vmem:[%s0 + $0x8] sm:$0xff]
  %v16 = vld [vmem:[%s0 + $0x10] sm:$0xff]
  %v17 = vld [vmem:[%s0 + $0x18] sm:$0xff]
  %v18 = vld [vmem:[%s0 + $0x20] sm:$0xff]
  %v19 = vld [vmem:[%s0 + $0x28] sm:$0xff]
  %v20 = vld [vmem:[%s0 + $0x30] sm:$0xff]
  %v21 = vld [vmem:[%s0 + $0x38] sm:$0xff]
  %v22 = vunpack.c.l.bf16 %v14
  %v23 = vunpack.c.h.bf16 %v14
  %v24 = vunpack.c.l.bf16 %v15
  %v25 = vunpack.c.h.bf16 %v15
  %v26 = vunpack.c.l.bf16 %v16
  %v27 = vunpack.c.h.bf16 %v16
  %v28 = vunpack.c.l.bf16 %v17
  %v29 = vunpack.c.h.bf16 %v17
  %v30 = vunpack.c.l.bf16 %v18
  %v31 = vunpack.c.h.bf16 %v18
  %v32 = vunpack.c.l.bf16 %v19
  %v33 = vunpack.c.h.bf16 %v19
  %v34 = vunpack.c.l.bf16 %v20
  %v35 = vunpack.c.h.bf16 %v20
  %v36 = vunpack.c.l.bf16 %v21
  %v37 = vunpack.c.h.bf16 %v21
  %v38 = vld [vmem:[%s1] sm:$0xff]
  %v39 = vld [vmem:[%s1 + $0x8] sm:$0xff]
  %v40 = vld [vmem:[%s1 + $0x10] sm:$0xff]
  %v41 = vld [vmem:[%s1 + $0x18] sm:$0xff]
  %43 = vset.pattern.permute.xlu0 0
  %44 = vperm.xlu0 %43, %v38
  %v45 = vpop.permute.xlu0 %44
  %48 = vset.pattern.permute.xlu0 0
  %49 = vperm.xlu0 %48, %v39
  %v50 = vpop.permute.xlu0 %49
  %53 = vset.pattern.permute.xlu0 0
  %54 = vperm.xlu0 %53, %v40
  %v55 = vpop.permute.xlu0 %54
  %58 = vset.pattern.permute.xlu0 0
  %59 = vperm.xlu0 %58, %v41
  %v60 = vpop.permute.xlu0 %59
  %v62 = vmul.f32 %v22, %v45
  %v63 = vmul.f32 %v23, %v45
  %v64 = vmul.f32 %v24, %v50
  %v65 = vmul.f32 %v25, %v50
  %v66 = vmul.f32 %v26, %v55
  %v67 = vmul.f32 %v27, %v55
  %v68 = vmul.f32 %v28, %v60
  %v69 = vmul.f32 %v29, %v60
  %v70 = vmul.f32 %v30, %v45
  %v71 = vmul.f32 %v31, %v45
  %v72 = vmul.f32 %v32, %v50
  %v73 = vmul.f32 %v33, %v50
  %v74 = vmul.f32 %v34, %v55
  %v75 = vmul.f32 %v35, %v55
  %v76 = vmul.f32 %v36, %v60
  %v77 = vmul.f32 %v37, %v60
  %v78 = vld [vmem:[%s2] sm:$0xff]
  %v79 = vld [vmem:[%s2 + $0x8] sm:$0xff]
  %v80 = vld [vmem:[%s2 + $0x10] sm:$0xff]
  %v81 = vld [vmem:[%s2 + $0x18] sm:$0xff]
  %83 = vset.pattern.permute.xlu0 0
  %84 = vperm.xlu0 %83, %v78
  %v85 = vpop.permute.xlu0 %84
  %88 = vset.pattern.permute.xlu0 0
  %89 = vperm.xlu0 %88, %v79
  %v90 = vpop.permute.xlu0 %89
  %93 = vset.pattern.permute.xlu0 0
  %94 = vperm.xlu0 %93, %v80
  %v95 = vpop.permute.xlu0 %94
  %98 = vset.pattern.permute.xlu0 0
  %99 = vperm.xlu0 %98, %v81
  %v100 = vpop.permute.xlu0 %99
  %v102 = vadd.f32 %v62, %v85
  %v103 = vadd.f32 %v63, %v85
  %v104 = vadd.f32 %v64, %v90
  %v105 = vadd.f32 %v65, %v90
  %v106 = vadd.f32 %v66, %v95
  %v107 = vadd.f32 %v67, %v95
  %v108 = vadd.f32 %v68, %v100
  %v109 = vadd.f32 %v69, %v100
  %v110 = vadd.f32 %v70, %v85
  %v111 = vadd.f32 %v71, %v85
  %v112 = vadd.f32 %v72, %v90
  %v113 = vadd.f32 %v73, %v90
  %v114 = vadd.f32 %v74, %v95
  %v115 = vadd.f32 %v75, %v95
  %v116 = vadd.f32 %v76, %v100
  %v117 = vadd.f32 %v77, %v100
  %v118 = vmax.f32 %v102, 0.0
  %v119 = vmax.f32 %v103, 0.0
  %v120 = vmax.f32 %v104, 0.0
  %v121 = vmax.f32 %v105, 0.0
  %v122 = vmax.f32 %v106, 0.0
  %v123 = vmax.f32 %v107, 0.0
  %v124 = vmax.f32 %v108, 0.0
  %v125 = vmax.f32 %v109, 0.0
  %v126 = vmax.f32 %v110, 0.0
  %v127 = vmax.f32 %v111, 0.0
  %v128 = vmax.f32 %v112, 0.0
  %v129 = vmax.f32 %v113, 0.0
  %v130 = vmax.f32 %v114, 0.0
  %v131 = vmax.f32 %v115, 0.0
  %v132 = vmax.f32 %v116, 0.0
  %v133 = vmax.f32 %v117, 0.0
  %134 = vst [vmem:[%s3] sm:$0xff] %v118
  %135 = vst [vmem:[%s3 + $0x8] sm:$0xff] %v119
  %136 = vst [vmem:[%s3 + $0x10] sm:$0xff] %v120
  %137 = vst [vmem:[%s3 + $0x18] sm:$0xff] %v121
  %138 = vst [vmem:[%s3 + $0x20] sm:$0xff] %v122
  %139 = vst [vmem:[%s3 + $0x28] sm:$0xff] %v123
  %140 = vst [vmem:[%s3 + $0x30] sm:$0xff] %v124
  %141 = vst [vmem:[%s3 + $0x38] sm:$0xff] %v125
  %142 = vst [vmem:[%s3 + $0x40] sm:$0xff] %v126
  %143 = vst [vmem:[%s3 + $0x48] sm:$0xff] %v127
  %144 = vst [vmem:[%s3 + $0x50] sm:$0xff] %v128
  %145 = vst [vmem:[%s3 + $0x58] sm:$0xff] %v129
  %146 = vst [vmem:[%s3 + $0x60] sm:$0xff] %v130
  %147 = vst [vmem:[%s3 + $0x68] sm:$0xff] %v131
  %148 = vst [vmem:[%s3 + $0x70] sm:$0xff] %v132
  %149 = vst [vmem:[%s3 + $0x78] sm:$0xff] %v133
  // Predicated region
  $region14: #{resconv5.3} parent=0 // pred_check
    _
  $region15: #{resconv5.3} parent=0 // pred_check_branch
    %151 = sbr.rel (0) target = $region17
  $region16: #{resconv5.3} parent=0 // pred_region
    _
  $region17: #{resconv5.3} parent=0 // pred_fallthru
    _
  // Predicated region
  $region18: #{resconv5.3} parent=0 // pred_check
    _
  $region19: #{resconv5.3} parent=0 // pred_check_branch
    %153 = sbr.rel (0) target = $region21
  $region20: #{resconv5.3} parent=0 // pred_region
    _
  $region21: #{resconv5.3} parent=0 // pred_fallthru
    _

// kernel: resconv5.2
$region0: #{resconv5.2}
  #allocation0 [shape = 'u32[]', space=smem, size = 0x4, offset = 0x4, fixed_abs, tag = 'smem constant byte address 0x4 - core index']
  #allocation1 [shape = 'u32[72,128]{1,0:T(1,128)}', space=vmem, size = 0x9000, scoped, tag = 'internal scratch']
  %s0 = inlined_call_operand.vmem [shape: f32[2,400,256], index: 0, kind: input, shape index: {}]
  %s1 = inlined_call_operand.vmem [shape: f32[32,400], index: 1, kind: input, shape index: {}]
  %s2 = inlined_call_operand.vmem [shape: f32[32,1], index: 2, kind: input, shape index: {}]
  %s3 = inlined_call_operand.vmem [shape: bf16[2,32,256], index: 3, kind: output, shape index: {0}]
  %s4 = inlined_call_operand.vmem [shape: f32[1,32,1], index: 4, kind: output, shape index: {1}]
  %s5 = inlined_call_operand.vmem [shape: f32[1,32,1], index: 5, kind: output, shape index: {2}]
  %6 = xla_tuple %s3, %s4, %s5
  %s7 = sld [smem:[#allocation0]]
  $region38: #{resconv5.2} parent=0
    _
  %s9 = ssub.s32 1, %s7
  %s10 = scalar_select 0, %s9, %s7
  // Predicated region
  $region2: #{resconv5.2} parent=0 // pred_check
    _
  $region3: #{resconv5.2} parent=0 // pred_check_branch
    %12 = sbr.rel (0) target = $region5
  $region4: #{resconv5.2} parent=0 // pred_region
    _
  $region5: #{resconv5.2} parent=0 // pred_fallthru
    _
  // Predicated region
  $region6: #{resconv5.2} parent=0 // pred_check
    _
  $region7: #{resconv5.2} parent=0 // pred_check_branch
    %14 = sbr.rel (0) target = $region9
  $region8: #{resconv5.2} parent=0 // pred_region
    _
  $region9: #{resconv5.2} parent=0 // pred_fallthru
    _
  // Predicated region
  $region10: #{resconv5.2} parent=0 // pred_check
    _
  $region11: #{resconv5.2} parent=0 // pred_check_branch
    %16 = sbr.rel (0) target = $region13
  $region12: #{resconv5.2} parent=0 // pred_region
    _
  $region13: #{resconv5.2} parent=0 // pred_fallthru
    _
  %v17 = vld [vmem:[%s1] sm:$0xff]
  %v18 = vld [vmem:[%s1 + $0x8] sm:$0xff]
  %v19 = vld [vmem:[%s1 + $0x10] sm:$0xff]
  %v20 = vld [vmem:[%s1 + $0x18] sm:$0xff]
  %v21 = vld [vmem:[%s1 + $0x20] sm:$0xff]
  %v22 = vld [vmem:[%s1 + $0x28] sm:$0xff]
  %v23 = vld [vmem:[%s1 + $0x30] sm:$0xff]
  %v24 = vld [vmem:[%s1 + $0x38] sm:$0xff]
  %v25 = vld [vmem:[%s1 + $0x40] sm:$0xff]
  %v26 = vld [vmem:[%s1 + $0x48] sm:$0xff]
  %v27 = vld [vmem:[%s1 + $0x50] sm:$0xff]
  %v28 = vld [vmem:[%s1 + $0x58] sm:$0xff]
  %v29 = vld [vmem:[%s1 + $0x60] sm:$0xff]
  %v30 = vld [vmem:[%s1 + $0x68] sm:$0xff]
  %v31 = vld [vmem:[%s1 + $0x70] sm:$0xff]
  %v32 = vld [vmem:[%s1 + $0x78] sm:$0xff]
  %v33 = vld [vmem:[%s2] sm:$0xff]
  %v34 = vld [vmem:[%s2 + $0x8] sm:$0xff]
  %v35 = vld [vmem:[%s2 + $0x10] sm:$0xff]
  %v36 = vld [vmem:[%s2 + $0x18] sm:$0xff]
  %v37 = vld [vmem:[%s0] sm:$0xff]
  %v38 = vld [vmem:[%s0 + $0x8] sm:$0xff]
  %v39 = vld [vmem:[%s0 + $0x10] sm:$0xff]
  %v40 = vld [vmem:[%s0 + $0x18] sm:$0xff]
  %v41 = vld [vmem:[%s0 + $0x20] sm:$0xff]
  %v42 = vld [vmem:[%s0 + $0x28] sm:$0xff]
  %v43 = vld [vmem:[%s0 + $0x30] sm:$0xff]
  %v44 = vld [vmem:[%s0 + $0x38] sm:$0xff]
  %v45 = vld [vmem:[%s0 + $0x40] sm:$0xff]
  %v46 = vld [vmem:[%s0 + $0x48] sm:$0xff]
  %v47 = vld [vmem:[%s0 + $0x50] sm:$0xff]
  %v48 = vld [vmem:[%s0 + $0x58] sm:$0xff]
  %v49 = vld [vmem:[%s0 + $0x60] sm:$0xff]
  %v50 = vld [vmem:[%s0 + $0x68] sm:$0xff]
  %v51 = vld [vmem:[%s0 + $0x70] sm:$0xff]
  %v52 = vld [vmem:[%s0 + $0x78] sm:$0xff]
  %v53 = vld [vmem:[%s0 + $0x80] sm:$0xff]
  %v54 = vld [vmem:[%s0 + $0x88] sm:$0xff]
  %v55 = vld [vmem:[%s0 + $0x90] sm:$0xff]
  %v56 = vld [vmem:[%s0 + $0x98] sm:$0xff]
  %v57 = vld [vmem:[%s0 + $0xa0] sm:$0xff]
  %v58 = vld [vmem:[%s0 + $0xa8] sm:$0xff]
  %v59 = vld [vmem:[%s0 + $0xb0] sm:$0xff]
  %v60 = vld [vmem:[%s0 + $0xb8] sm:$0xff]
  %v61 = vld [vmem:[%s0 + $0xc0] sm:$0xff]
  %v62 = vld [vmem:[%s0 + $0xc8] sm:$0xff]
  %v63 = vld [vmem:[%s0 + $0xd0] sm:$0xff]
  %v64 = vld [vmem:[%s0 + $0xd8] sm:$0xff]
  %v65 = vld [vmem:[%s0 + $0xe0] sm:$0xff]
  %v66 = vld [vmem:[%s0 + $0xe8] sm:$0xff]
  %v67 = vld [vmem:[%s0 + $0xf0] sm:$0xff]
  %v68 = vld [vmem:[%s0 + $0xf8] sm:$0xff]
  %v69 = vld [vmem:[%s0 + $0x100] sm:$0xff]
  %v70 = vld [vmem:[%s0 + $0x108] sm:$0xff]
  %v71 = vld [vmem:[%s0 + $0x110] sm:$0xff]
  %v72 = vld [vmem:[%s0 + $0x118] sm:$0xff]
  %v73 = vld [vmem:[%s0 + $0x120] sm:$0xff]
  %v74 = vld [vmem:[%s0 + $0x128] sm:$0xff]
  %v75 = vld [vmem:[%s0 + $0x130] sm:$0xff]
  %v76 = vld [vmem:[%s0 + $0x138] sm:$0xff]
  %v77 = vld [vmem:[%s0 + $0x140] sm:$0xff]
  %v78 = vld [vmem:[%s0 + $0x148] sm:$0xff]
  %v79 = vld [vmem:[%s0 + $0x150] sm:$0xff]
  %v80 = vld [vmem:[%s0 + $0x158] sm:$0xff]
  %v81 = vld [vmem:[%s0 + $0x160] sm:$0xff]
  %v82 = vld [vmem:[%s0 + $0x168] sm:$0xff]
  %v83 = vld [vmem:[%s0 + $0x170] sm:$0xff]
  %v84 = vld [vmem:[%s0 + $0x178] sm:$0xff]
  %v85 = vld [vmem:[%s0 + $0x180] sm:$0xff]
  %v86 = vld [vmem:[%s0 + $0x188] sm:$0xff]
  %v87 = vld [vmem:[%s0 + $0x190] sm:$0xff]
  %v88 = vld [vmem:[%s0 + $0x198] sm:$0xff]
  %v89 = vld [vmem:[%s0 + $0x1a0] sm:$0xff]
  %v90 = vld [vmem:[%s0 + $0x1a8] sm:$0xff]
  %v91 = vld [vmem:[%s0 + $0x1b0] sm:$0xff]
  %v92 = vld [vmem:[%s0 + $0x1b8] sm:$0xff]
  %v93 = vld [vmem:[%s0 + $0x1c0] sm:$0xff]
  %v94 = vld [vmem:[%s0 + $0x1c8] sm:$0xff]
  %v95 = vld [vmem:[%s0 + $0x1d0] sm:$0xff]
  %v96 = vld [vmem:[%s0 + $0x1d8] sm:$0xff]
  %v97 = vld [vmem:[%s0 + $0x1e0] sm:$0xff]
  %v98 = vld [vmem:[%s0 + $0x1e8] sm:$0xff]
  %v99 = vld [vmem:[%s0 + $0x1f0] sm:$0xff]
  %v100 = vld [vmem:[%s0 + $0x1f8] sm:$0xff]
  %v101 = vld [vmem:[%s0 + $0x200] sm:$0xff]
  %v102 = vld [vmem:[%s0 + $0x208] sm:$0xff]
  %v103 = vld [vmem:[%s0 + $0x210] sm:$0xff]
  %v104 = vld [vmem:[%s0 + $0x218] sm:$0xff]
  %v105 = vld [vmem:[%s0 + $0x220] sm:$0xff]
  %v106 = vld [vmem:[%s0 + $0x228] sm:$0xff]
  %v107 = vld [vmem:[%s0 + $0x230] sm:$0xff]
  %v108 = vld [vmem:[%s0 + $0x238] sm:$0xff]
  %v109 = vld [vmem:[%s0 + $0x240] sm:$0xff]
  %v110 = vld [vmem:[%s0 + $0x248] sm:$0xff]
  %v111 = vld [vmem:[%s0 + $0x250] sm:$0xff]
  %v112 = vld [vmem:[%s0 + $0x258] sm:$0xff]
  %v113 = vld [vmem:[%s0 + $0x260] sm:$0xff]
  %v114 = vld [vmem:[%s0 + $0x268] sm:$0xff]
  %v115 = vld [vmem:[%s0 + $0x270] sm:$0xff]
  %v116 = vld [vmem:[%s0 + $0x278] sm:$0xff]
  %v117 = vld [vmem:[%s0 + $0x280] sm:$0xff]
  %v118 = vld [vmem:[%s0 + $0x288] sm:$0xff]
  %v119 = vld [vmem:[%s0 + $0x290] sm:$0xff]
  %v120 = vld [vmem:[%s0 + $0x298] sm:$0xff]
  %v121 = vld [vmem:[%s0 + $0x2a0] sm:$0xff]
  %v122 = vld [vmem:[%s0 + $0x2a8] sm:$0xff]
  %v123 = vld [vmem:[%s0 + $0x2b0] sm:$0xff]
  %v124 = vld [vmem:[%s0 + $0x2b8] sm:$0xff]
  %v125 = vld [vmem:[%s0 + $0x2c0] sm:$0xff]
  %v126 = vld [vmem:[%s0 + $0x2c8] sm:$0xff]
  %v127 = vld [vmem:[%s0 + $0x2d0] sm:$0xff]
  %v128 = vld [vmem:[%s0 + $0x2d8] sm:$0xff]
  %v129 = vld [vmem:[%s0 + $0x2e0] sm:$0xff]
  %v130 = vld [vmem:[%s0 + $0x2e8] sm:$0xff]
  %v131 = vld [vmem:[%s0 + $0x2f0] sm:$0xff]
  %v132 = vld [vmem:[%s0 + $0x2f8] sm:$0xff]
  %v133 = vld [vmem:[%s0 + $0x300] sm:$0xff]
  %v134 = vld [vmem:[%s0 + $0x308] sm:$0xff]
  %v135 = vld [vmem:[%s0 + $0x310] sm:$0xff]
  %v136 = vld [vmem:[%s0 + $0x318] sm:$0xff]
  %138 = vset.pattern.permute.xlu0 0
  %139 = vperm.xlu0 %138, %v33
  %v140 = vpop.permute.xlu0 %139
  %143 = vset.pattern.permute.xlu0 0
  %144 = vperm.xlu0 %143, %v34
  %v145 = vpop.permute.xlu0 %144
  %148 = vset.pattern.permute.xlu0 0
  %149 = vperm.xlu0 %148, %v35
  %v150 = vpop.permute.xlu0 %149
  %153 = vset.pattern.permute.xlu0 0
  %154 = vperm.xlu0 %153, %v36
  %v155 = vpop.permute.xlu0 %154
  %vm157 = vcmask 130048
  %v159 = vsel %vm157, %v20, 0
  %v162 = vsel %vm157, %v24, 0
  %v165 = vsel %vm157, %v28, 0
  %v168 = vsel %vm157, %v32, 0
  %170 = vmatpush.msra.mxu0 %v67
  %171 = vmatpush.msra.mxu0 %v65
  %172 = vmatpush.msra.mxu0 %v63
  %173 = vmatpush.msra.mxu0 %v61
  %174 = vmatpush.msra.mxu0 %v59
  %175 = vmatpush.msra.mxu0 %v57
  %176 = vmatpush.msra.mxu0 %v55
  %177 = vmatpush.msra.mxu0 %v53
  %178 = vmatpush.msra.mxu0 %v51
  %179 = vmatpush.msra.mxu0 %v49
  %180 = vmatpush.msra.mxu0 %v47
  %181 = vmatpush.msra.mxu0 %v45
  %182 = vmatpush.msra.mxu0 %v43
  %183 = vmatpush.msra.mxu0 %v41
  %184 = vmatpush.msra.mxu0 %v39
  %185 = vmatpush.msra.mxu0 %v37
  %186 = vmatmul.f32.gmra.mxu0 %v17
  %v187 = vpop.f32.mrf.mxu0
  %v188 = vadd.f32 %v140, %v187
  %189 = vmatmul.f32.gmra.mxu0 %v21
  %v190 = vpop.f32.mrf.mxu0
  %v191 = vadd.f32 %v145, %v190
  %192 = vmatmul.f32.gmra.mxu0 %v25
  %v193 = vpop.f32.mrf.mxu0
  %v194 = vadd.f32 %v150, %v193
  %195 = vmatmul.f32.gmra.mxu0 %v29
  %v196 = vpop.f32.mrf.mxu0
  %v197 = vadd.f32 %v155, %v196
  %198 = vdwg.mxu0
  %199 = vmatpush.msra.mxu0 %v99
  %200 = vmatpush.msra.mxu0 %v97
  %201 = vmatpush.msra.mxu0 %v95
  %202 = vmatpush.msra.mxu0 %v93
  %203 = vmatpush.msra.mxu0 %v91
  %204 = vmatpush.msra.mxu0 %v89
  %205 = vmatpush.msra.mxu0 %v87
  %206 = vmatpush.msra.mxu0 %v85
  %207 = vmatpush.msra.mxu0 %v83
  %208 = vmatpush.msra.mxu0 %v81
  %209 = vmatpush.msra.mxu0 %v79
  %210 = vmatpush.msra.mxu0 %v77
  %211 = vmatpush.msra.mxu0 %v75
  %212 = vmatpush.msra.mxu0 %v73
  %213 = vmatpush.msra.mxu0 %v71
  %214 = vmatpush.msra.mxu0 %v69
  %215 = vmatmul.f32.gmra.mxu0 %v18
  %v216 = vpop.f32.mrf.mxu0
  %v217 = vadd.f32 %v188, %v216
  %218 = vmatmul.f32.gmra.mxu0 %v22
  %v219 = vpop.f32.mrf.mxu0
  %v220 = vadd.f32 %v191, %v219
  %221 = vmatmul.f32.gmra.mxu0 %v26
  %v222 = vpop.f32.mrf.mxu0
  %v223 = vadd.f32 %v194, %v222
  %224 = vmatmul.f32.gmra.mxu0 %v30
  %v225 = vpop.f32.mrf.mxu0
  %v226 = vadd.f32 %v197, %v225
  %227 = vdwg.mxu0
  %228 = vmatpush.msra.mxu0 %v131
  %229 = vmatpush.msra.mxu0 %v129
  %230 = vmatpush.msra.mxu0 %v127
  %231 = vmatpush.msra.mxu0 %v125
  %232 = vmatpush.msra.mxu0 %v123
  %233 = vmatpush.msra.mxu0 %v121
  %234 = vmatpush.msra.mxu0 %v119
  %235 = vmatpush.msra.mxu0 %v117
  %236 = vmatpush.msra.mxu0 %v115
  %237 = vmatpush.msra.mxu0 %v113
  %238 = vmatpush.msra.mxu0 %v111
  %239 = vmatpush.msra.mxu0 %v109
  %240 = vmatpush.msra.mxu0 %v107
  %241 = vmatpush.msra.mxu0 %v105
  %242 = vmatpush.msra.mxu0 %v103
  %243 = vmatpush.msra.mxu0 %v101
  %244 = vmatmul.f32.gmra.mxu0 %v19
  %v245 = vpop.f32.mrf.mxu0
  %v246 = vadd.f32 %v217, %v245
  %247 = vmatmul.f32.gmra.mxu0 %v23
  %v248 = vpop.f32.mrf.mxu0
  %v249 = vadd.f32 %v220, %v248
  %250 = vmatmul.f32.gmra.mxu0 %v27
  %v251 = vpop.f32.mrf.mxu0
  %v252 = vadd.f32 %v223, %v251
  %253 = vmatmul.f32.gmra.mxu0 %v31
  %v254 = vpop.f32.mrf.mxu0
  %v255 = vadd.f32 %v226, %v254
  %256 = vdwg.mxu0
  %257 = vmatpush.msra.mxu0 0.0
  %258 = vmatpush.msra.mxu0 0.0
  %259 = vmatpush.msra.mxu0 0.0
  %260 = vmatpush.msra.mxu0 0.0
  %261 = vmatpush.msra.mxu0 0.0
  %262 = vmatpush.msra.mxu0 0.0
  %263 = vmatpush.msra.mxu0 0.0
  %264 = vmatpush.msra.mxu0 0.0
  %265 = vmatpush.msra.mxu0 0.0
  %266 = vmatpush.msra.mxu0 0.0
  %267 = vmatpush.msra.mxu0 0.0
  %268 = vmatpush.msra.mxu0 0.0
  %269 = vmatpush.msra.mxu0 0.0
  %270 = vmatpush.msra.mxu0 0.0
  %271 = vmatpush.msra.mxu0 %v135
  %272 = vmatpush.msra.mxu0 %v133
  %273 = vmatmul.f32.gmra.mxu0 %v159
  %v274 = vpop.f32.mrf.mxu0
  %v275 = vadd.f32 %v246, %v274
  %276 = vmatmul.f32.gmra.mxu0 %v162
  %v277 = vpop.f32.mrf.mxu0
  %v278 = vadd.f32 %v249, %v277
  %279 = vmatmul.f32.gmra.mxu0 %v165
  %v280 = vpop.f32.mrf.mxu0
  %v281 = vadd.f32 %v252, %v280
  %282 = vmatmul.f32.gmra.mxu0 %v168
  %v283 = vpop.f32.mrf.mxu0
  %v284 = vadd.f32 %v255, %v283
  %285 = vdwg.mxu0
  %286 = vmatpush.msra.mxu0 %v68
  %287 = vmatpush.msra.mxu0 %v66
  %288 = vmatpush.msra.mxu0 %v64
  %289 = vmatpush.msra.mxu0 %v62
  %290 = vmatpush.msra.mxu0 %v60
  %291 = vmatpush.msra.mxu0 %v58
  %292 = vmatpush.msra.mxu0 %v56
  %293 = vmatpush.msra.mxu0 %v54
  %294 = vmatpush.msra.mxu0 %v52
  %295 = vmatpush.msra.mxu0 %v50
  %296 = vmatpush.msra.mxu0 %v48
  %297 = vmatpush.msra.mxu0 %v46
  %298 = vmatpush.msra.mxu0 %v44
  %299 = vmatpush.msra.mxu0 %v42
  %300 = vmatpush.msra.mxu0 %v40
  %301 = vmatpush.msra.mxu0 %v38
  %302 = vmatmul.f32.gmra.mxu0 %v17
  %v303 = vpop.f32.mrf.mxu0
  %v304 = vadd.f32 %v140, %v303
  %305 = vmatmul.f32.gmra.mxu0 %v21
  %v306 = vpop.f32.mrf.mxu0
  %v307 = vadd.f32 %v145, %v306
  %308 = vmatmul.f32.gmra.mxu0 %v25
  %v309 = vpop.f32.mrf.mxu0
  %v310 = vadd.f32 %v150, %v309
  %311 = vmatmul.f32.gmra.mxu0 %v29
  %v312 = vpop.f32.mrf.mxu0
  %v313 = vadd.f32 %v155, %v312
  %314 = vdwg.mxu0
  %315 = vmatpush.msra.mxu0 %v100
  %316 = vmatpush.msra.mxu0 %v98
  %317 = vmatpush.msra.mxu0 %v96
  %318 = vmatpush.msra.mxu0 %v94
  %319 = vmatpush.msra.mxu0 %v92
  %320 = vmatpush.msra.mxu0 %v90
  %321 = vmatpush.msra.mxu0 %v88
  %322 = vmatpush.msra.mxu0 %v86
  %323 = vmatpush.msra.mxu0 %v84
  %324 = vmatpush.msra.mxu0 %v82
  %325 = vmatpush.msra.mxu0 %v80
  %326 = vmatpush.msra.mxu0 %v78
  %327 = vmatpush.msra.mxu0 %v76
  %328 = vmatpush.msra.mxu0 %v74
  %329 = vmatpush.msra.mxu0 %v72
  %330 = vmatpush.msra.mxu0 %v70
  %331 = vmatmul.f32.gmra.mxu0 %v18
  %v332 = vpop.f32.mrf.mxu0
  %v333 = vadd.f32 %v304, %v332
  %334 = vmatmul.f32.gmra.mxu0 %v22
  %v335 = vpop.f32.mrf.mxu0
  %v336 = vadd.f32 %v307, %v335
  %337 = vmatmul.f32.gmra.mxu0 %v26
  %v338 = vpop.f32.mrf.mxu0
  %v339 = vadd.f32 %v310, %v338
  %340 = vmatmul.f32.gmra.mxu0 %v30
  %v341 = vpop.f32.mrf.mxu0
  %v342 = vadd.f32 %v313, %v341
  %343 = vdwg.mxu0
  %344 = vmatpush.msra.mxu0 %v132
  %345 = vmatpush.msra.mxu0 %v130
  %346 = vmatpush.msra.mxu0 %v128
  %347 = vmatpush.msra.mxu0 %v126
  %348 = vmatpush.msra.mxu0 %v124
  %349 = vmatpush.msra.mxu0 %v122
  %350 = vmatpush.msra.mxu0 %v120
  %351 = vmatpush.msra.mxu0 %v118
  %352 = vmatpush.msra.mxu0 %v116
  %353 = vmatpush.msra.mxu0 %v114
  %354 = vmatpush.msra.mxu0 %v112
  %355 = vmatpush.msra.mxu0 %v110
  %356 = vmatpush.msra.mxu0 %v108
  %357 = vmatpush.msra.mxu0 %v106
  %358 = vmatpush.msra.mxu0 %v104
  %359 = vmatpush.msra.mxu0 %v102
  %360 = vmatmul.f32.gmra.mxu0 %v19
  %v361 = vpop.f32.mrf.mxu0
  %v362 = vadd.f32 %v333, %v361
  %363 = vmatmul.f32.gmra.mxu0 %v23
  %v364 = vpop.f32.mrf.mxu0
  %v365 = vadd.f32 %v336, %v364
  %366 = vmatmul.f32.gmra.mxu0 %v27
  %v367 = vpop.f32.mrf.mxu0
  %v368 = vadd.f32 %v339, %v367
  %369 = vmatmul.f32.gmra.mxu0 %v31
  %v370 = vpop.f32.mrf.mxu0
  %v371 = vadd.f32 %v342, %v370
  %372 = vdwg.mxu0
  %373 = vmatpush.msra.mxu0 0.0
  %374 = vmatpush.msra.mxu0 0.0
  %375 = vmatpush.msra.mxu0 0.0
  %376 = vmatpush.msra.mxu0 0.0
  %377 = vmatpush.msra.mxu0 0.0
  %378 = vmatpush.msra.mxu0 0.0
  %379 = vmatpush.msra.mxu0 0.0
  %380 = vmatpush.msra.mxu0 0.0
  %381 = vmatpush.msra.mxu0 0.0
  %382 = vmatpush.msra.mxu0 0.0
  %383 = vmatpush.msra.mxu0 0.0
  %384 = vmatpush.msra.mxu0 0.0
  %385 = vmatpush.msra.mxu0 0.0
  %386 = vmatpush.msra.mxu0 0.0
  %387 = vmatpush.msra.mxu0 %v136
  %388 = vmatpush.msra.mxu0 %v134
  %389 = vmatmul.f32.gmra.mxu0 %v159
  %v390 = vpop.f32.mrf.mxu0
  %v391 = vadd.f32 %v362, %v390
  %392 = vmatmul.f32.gmra.mxu0 %v162
  %v393 = vpop.f32.mrf.mxu0
  %v394 = vadd.f32 %v365, %v393
  %395 = vmatmul.f32.gmra.mxu0 %v165
  %v396 = vpop.f32.mrf.mxu0
  %v397 = vadd.f32 %v368, %v396
  %398 = vmatmul.f32.gmra.mxu0 %v168
  %v399 = vpop.f32.mrf.mxu0
  %v400 = vadd.f32 %v371, %v399
  %401 = vdwg.mxu0
  %v402 = vpack.c.bf16 %v391, %v275
  %v403 = vpack.c.bf16 %v394, %v278
  %v404 = vpack.c.bf16 %v397, %v281
  %v405 = vpack.c.bf16 %v400, %v284
  %406 = vst [vmem:[%s3] sm:$0xff] %v402
  %407 = vst [vmem:[%s3 + $0x8] sm:$0xff] %v403
  %408 = vst [vmem:[%s3 + $0x10] sm:$0xff] %v404
  %409 = vst [vmem:[%s3 + $0x18] sm:$0xff] %v405
  %v410 = vadd.f32 %v275, %v391
  %411 = vadd.xlane.f32.xlu0 %v410
  %v412 = vpop.xlane.xlu0 %411
  %v413 = vadd.f32 %v278, %v394
  %414 = vadd.xlane.f32.xlu0 %v413
  %v415 = vpop.xlane.xlu0 %414
  %v416 = vadd.f32 %v281, %v397
  %417 = vadd.xlane.f32.xlu0 %v416
  %v418 = vpop.xlane.xlu0 %417
  %v419 = vadd.f32 %v284, %v400
  %420 = vadd.xlane.f32.xlu0 %v419
  %v421 = vpop.xlane.xlu0 %420
  %v422 = vadd.f32 %v412, 0.0
  %v423 = vadd.f32 %v415, 0.0
  %v424 = vadd.f32 %v418, 0.0
  %v425 = vadd.f32 %v421, 0.0
  %v426 = vmul.f32 %v275, %v275
  %v427 = vmul.f32 %v391, %v391
  %v428 = vmul.f32 %v278, %v278
  %v429 = vmul.f32 %v394, %v394
  %v430 = vmul.f32 %v281, %v281
  %v431 = vmul.f32 %v397, %v397
  %v432 = vmul.f32 %v284, %v284
  %v433 = vmul.f32 %v400, %v400
  %v434 = vadd.f32 %v426, %v427
  %435 = vadd.xlane.f32.xlu0 %v434
  %v436 = vpop.xlane.xlu0 %435
  %v437 = vadd.f32 %v428, %v429
  %438 = vadd.xlane.f32.xlu0 %v437
  %v439 = vpop.xlane.xlu0 %438
  %v440 = vadd.f32 %v430, %v431
  %441 = vadd.xlane.f32.xlu0 %v440
  %v442 = vpop.xlane.xlu0 %441
  %v443 = vadd.f32 %v432, %v433
  %444 = vadd.xlane.f32.xlu0 %v443
  %v445 = vpop.xlane.xlu0 %444
  %v446 = vadd.f32 %v436, 0.0
  %v447 = vadd.f32 %v439, 0.0
  %v448 = vadd.f32 %v442, 0.0
  %v449 = vadd.f32 %v445, 0.0
  %s450 = scalar_lea.vmem %s0, 800
  %v451 = vld [vmem:[%s450] sm:$0xff]
  %v452 = vld [vmem:[%s450 + $0x8] sm:$0xff]
  %v453 = vld [vmem:[%s450 + $0x10] sm:$0xff]
  %v454 = vld [vmem:[%s450 + $0x18] sm:$0xff]
  %v455 = vld [vmem:[%s450 + $0x20] sm:$0xff]
  %v456 = vld [vmem:[%s450 + $0x28] sm:$0xff]
  %v457 = vld [vmem:[%s450 + $0x30] sm:$0xff]
  %v458 = vld [vmem:[%s450 + $0x38] sm:$0xff]
  %v459 = vld [vmem:[%s450 + $0x40] sm:$0xff]
  %v460 = vld [vmem:[%s450 + $0x48] sm:$0xff]
  %v461 = vld [vmem:[%s450 + $0x50] sm:$0xff]
  %v462 = vld [vmem:[%s450 + $0x58] sm:$0xff]
  %v463 = vld [vmem:[%s450 + $0x60] sm:$0xff]
  %v464 = vld [vmem:[%s450 + $0x68] sm:$0xff]
  %v465 = vld [vmem:[%s450 + $0x70] sm:$0xff]
  %v466 = vld [vmem:[%s450 + $0x78] sm:$0xff]
  %v467 = vld [vmem:[%s450 + $0x80] sm:$0xff]
  %v468 = vld [vmem:[%s450 + $0x88] sm:$0xff]
  %v469 = vld [vmem:[%s450 + $0x90] sm:$0xff]
  %v470 = vld [vmem:[%s450 + $0x98] sm:$0xff]
  %v471 = vld [vmem:[%s450 + $0xa0] sm:$0xff]
  %v472 = vld [vmem:[%s450 + $0xa8] sm:$0xff]
  %v473 = vld [vmem:[%s450 + $0xb0] sm:$0xff]
  %v474 = vld [vmem:[%s450 + $0xb8] sm:$0xff]
  %v475 = vld [vmem:[%s450 + $0xc0] sm:$0xff]
  %v476 = vld [vmem:[%s450 + $0xc8] sm:$0xff]
  %v477 = vld [vmem:[%s450 + $0xd0] sm:$0xff]
  %v478 = vld [vmem:[%s450 + $0xd8] sm:$0xff]
  %v479 = vld [vmem:[%s450 + $0xe0] sm:$0xff]
  %v480 = vld [vmem:[%s450 + $0xe8] sm:$0xff]
  %v481 = vld [vmem:[%s450 + $0xf0] sm:$0xff]
  %v482 = vld [vmem:[%s450 + $0xf8] sm:$0xff]
  %v483 = vld [vmem:[%s450 + $0x100] sm:$0xff]
  %v484 = vld [vmem:[%s450 + $0x108] sm:$0xff]
  %v485 = vld [vmem:[%s450 + $0x110] sm:$0xff]
  %v486 = vld [vmem:[%s450 + $0x118] sm:$0xff]
  %v487 = vld [vmem:[%s450 + $0x120] sm:$0xff]
  %v488 = vld [vmem:[%s450 + $0x128] sm:$0xff]
  %v489 = vld [vmem:[%s450 + $0x130] sm:$0xff]
  %v490 = vld [vmem:[%s450 + $0x138] sm:$0xff]
  %v491 = vld [vmem:[%s450 + $0x140] sm:$0xff]
  %v492 = vld [vmem:[%s450 + $0x148] sm:$0xff]
  %v493 = vld [vmem:[%s450 + $0x150] sm:$0xff]
  %v494 = vld [vmem:[%s450 + $0x158] sm:$0xff]
  %v495 = vld [vmem:[%s450 + $0x160] sm:$0xff]
  %v496 = vld [vmem:[%s450 + $0x168] sm:$0xff]
  %v497 = vld [vmem:[%s450 + $0x170] sm:$0xff]
  %v498 = vld [vmem:[%s450 + $0x178] sm:$0xff]
  %v499 = vld [vmem:[%s450 + $0x180] sm:$0xff]
  %v500 = vld [vmem:[%s450 + $0x188] sm:$0xff]
  %v501 = vld [vmem:[%s450 + $0x190] sm:$0xff]
  %v502 = vld [vmem:[%s450 + $0x198] sm:$0xff]
  %v503 = vld [vmem:[%s450 + $0x1a0] sm:$0xff]
  %v504 = vld [vmem:[%s450 + $0x1a8] sm:$0xff]
  %v505 = vld [vmem:[%s450 + $0x1b0] sm:$0xff]
  %v506 = vld [vmem:[%s450 + $0x1b8] sm:$0xff]
  %v507 = vld [vmem:[%s450 + $0x1c0] sm:$0xff]
  %v508 = vld [vmem:[%s450 + $0x1c8] sm:$0xff]
  %v509 = vld [vmem:[%s450 + $0x1d0] sm:$0xff]
  %v510 = vld [vmem:[%s450 + $0x1d8] sm:$0xff]
  %v511 = vld [vmem:[%s450 + $0x1e0] sm:$0xff]
  %v512 = vld [vmem:[%s450 + $0x1e8] sm:$0xff]
  %v513 = vld [vmem:[%s450 + $0x1f0] sm:$0xff]
  %v514 = vld [vmem:[%s450 + $0x1f8] sm:$0xff]
  %v515 = vld [vmem:[%s450 + $0x200] sm:$0xff]
  %v516 = vld [vmem:[%s450 + $0x208] sm:$0xff]
  %v517 = vld [vmem:[%s450 + $0x210] sm:$0xff]
  %v518 = vld [vmem:[%s450 + $0x218] sm:$0xff]
  %v519 = vld [vmem:[%s450 + $0x220] sm:$0xff]
  %v520 = vld [vmem:[%s450 + $0x228] sm:$0xff]
  %v521 = vld [vmem:[%s450 + $0x230] sm:$0xff]
  %v522 = vld [vmem:[%s450 + $0x238] sm:$0xff]
  %v523 = vld [vmem:[%s450 + $0x240] sm:$0xff]
  %v524 = vld [vmem:[%s450 + $0x248] sm:$0xff]
  %v525 = vld [vmem:[%s450 + $0x250] sm:$0xff]
  %v526 = vld [vmem:[%s450 + $0x258] sm:$0xff]
  %v527 = vld [vmem:[%s450 + $0x260] sm:$0xff]
  %v528 = vld [vmem:[%s450 + $0x268] sm:$0xff]
  %v529 = vld [vmem:[%s450 + $0x270] sm:$0xff]
  %v530 = vld [vmem:[%s450 + $0x278] sm:$0xff]
  %v531 = vld [vmem:[%s450 + $0x280] sm:$0xff]
  %v532 = vld [vmem:[%s450 + $0x288] sm:$0xff]
  %v533 = vld [vmem:[%s450 + $0x290] sm:$0xff]
  %v534 = vld [vmem:[%s450 + $0x298] sm:$0xff]
  %v535 = vld [vmem:[%s450 + $0x2a0] sm:$0xff]
  %v536 = vld [vmem:[%s450 + $0x2a8] sm:$0xff]
  %v537 = vld [vmem:[%s450 + $0x2b0] sm:$0xff]
  %v538 = vld [vmem:[%s450 + $0x2b8] sm:$0xff]
  %v539 = vld [vmem:[%s450 + $0x2c0] sm:$0xff]
  %v540 = vld [vmem:[%s450 + $0x2c8] sm:$0xff]
  %v541 = vld [vmem:[%s450 + $0x2d0] sm:$0xff]
  %v542 = vld [vmem:[%s450 + $0x2d8] sm:$0xff]
  %v543 = vld [vmem:[%s450 + $0x2e0] sm:$0xff]
  %v544 = vld [vmem:[%s450 + $0x2e8] sm:$0xff]
  %v545 = vld [vmem:[%s450 + $0x2f0] sm:$0xff]
  %v546 = vld [vmem:[%s450 + $0x2f8] sm:$0xff]
  %v547 = vld [vmem:[%s450 + $0x300] sm:$0xff]
  %v548 = vld [vmem:[%s450 + $0x308] sm:$0xff]
  %v549 = vld [vmem:[%s450 + $0x310] sm:$0xff]
  %v550 = vld [vmem:[%s450 + $0x318] sm:$0xff]
  %551 = vmatpush.msra.mxu0 %v481
  %552 = vmatpush.msra.mxu0 %v479
  %553 = vmatpush.msra.mxu0 %v477
  %554 = vmatpush.msra.mxu0 %v475
  %555 = vmatpush.msra.mxu0 %v473
  %556 = vmatpush.msra.mxu0 %v471
  %557 = vmatpush.msra.mxu0 %v469
  %558 = vmatpush.msra.mxu0 %v467
  %559 = vmatpush.msra.mxu0 %v465
  %560 = vmatpush.msra.mxu0 %v463
  %561 = vmatpush.msra.mxu0 %v461
  %562 = vmatpush.msra.mxu0 %v459
  %563 = vmatpush.msra.mxu0 %v457
  %564 = vmatpush.msra.mxu0 %v455
  %565 = vmatpush.msra.mxu0 %v453
  %566 = vmatpush.msra.mxu0 %v451
  %567 = vmatmul.f32.gmra.mxu0 %v17
  %v568 = vpop.f32.mrf.mxu0
  %v569 = vadd.f32 %v140, %v568
  %570 = vmatmul.f32.gmra.mxu0 %v21
  %v571 = vpop.f32.mrf.mxu0
  %v572 = vadd.f32 %v145, %v571
  %573 = vmatmul.f32.gmra.mxu0 %v25
  %v574 = vpop.f32.mrf.mxu0
  %v575 = vadd.f32 %v150, %v574
  %576 = vmatmul.f32.gmra.mxu0 %v29
  %v577 = vpop.f32.mrf.mxu0
  %v578 = vadd.f32 %v155, %v577
  %579 = vdwg.mxu0
  %580 = vmatpush.msra.mxu0 %v513
  %581 = vmatpush.msra.mxu0 %v511
  %582 = vmatpush.msra.mxu0 %v509
  %583 = vmatpush.msra.mxu0 %v507
  %584 = vmatpush.msra.mxu0 %v505
  %585 = vmatpush.msra.mxu0 %v503
  %586 = vmatpush.msra.mxu0 %v501
  %587 = vmatpush.msra.mxu0 %v499
  %588 = vmatpush.msra.mxu0 %v497
  %589 = vmatpush.msra.mxu0 %v495
  %590 = vmatpush.msra.mxu0 %v493
  %591 = vmatpush.msra.mxu0 %v491
  %592 = vmatpush.msra.mxu0 %v489
  %593 = vmatpush.msra.mxu0 %v487
  %594 = vmatpush.msra.mxu0 %v485
  %595 = vmatpush.msra.mxu0 %v483
  %596 = vmatmul.f32.gmra.mxu0 %v18
  %v597 = vpop.f32.mrf.mxu0
  %v598 = vadd.f32 %v569, %v597
  %599 = vmatmul.f32.gmra.mxu0 %v22
  %v600 = vpop.f32.mrf.mxu0
  %v601 = vadd.f32 %v572, %v600
  %602 = vmatmul.f32.gmra.mxu0 %v26
  %v603 = vpop.f32.mrf.mxu0
  %v604 = vadd.f32 %v575, %v603
  %605 = vmatmul.f32.gmra.mxu0 %v30
  %v606 = vpop.f32.mrf.mxu0
  %v607 = vadd.f32 %v578, %v606
  %608 = vdwg.mxu0
  %609 = vmatpush.msra.mxu0 %v545
  %610 = vmatpush.msra.mxu0 %v543
  %611 = vmatpush.msra.mxu0 %v541
  %612 = vmatpush.msra.mxu0 %v539
  %613 = vmatpush.msra.mxu0 %v537
  %614 = vmatpush.msra.mxu0 %v535
  %615 = vmatpush.msra.mxu0 %v533
  %616 = vmatpush.msra.mxu0 %v531
  %617 = vmatpush.msra.mxu0 %v529
  %618 = vmatpush.msra.mxu0 %v527
  %619 = vmatpush.msra.mxu0 %v525
  %620 = vmatpush.msra.mxu0 %v523
  %621 = vmatpush.msra.mxu0 %v521
  %622 = vmatpush.msra.mxu0 %v519
  %623 = vmatpush.msra.mxu0 %v517
  %624 = vmatpush.msra.mxu0 %v515
  %625 = vmatmul.f32.gmra.mxu0 %v19
  %v626 = vpop.f32.mrf.mxu0
  %v627 = vadd.f32 %v598, %v626
  %628 = vmatmul.f32.gmra.mxu0 %v23
  %v629 = vpop.f32.mrf.mxu0
  %v630 = vadd.f32 %v601, %v629
  %631 = vmatmul.f32.gmra.mxu0 %v27
  %v632 = vpop.f32.mrf.mxu0
  %v633 = vadd.f32 %v604, %v632
  %634 = vmatmul.f32.gmra.mxu0 %v31
  %v635 = vpop.f32.mrf.mxu0
  %v636 = vadd.f32 %v607, %v635
  %637 = vdwg.mxu0
  %638 = vmatpush.msra.mxu0 0.0
  %639 = vmatpush.msra.mxu0 0.0
  %640 = vmatpush.msra.mxu0 0.0
  %641 = vmatpush.msra.mxu0 0.0
  %642 = vmatpush.msra.mxu0 0.0
  %643 = vmatpush.msra.mxu0 0.0
  %644 = vmatpush.msra.mxu0 0.0
  %645 = vmatpush.msra.mxu0 0.0
  %646 = vmatpush.msra.mxu0 0.0
  %647 = vmatpush.msra.mxu0 0.0
  %648 = vmatpush.msra.mxu0 0.0
  %649 = vmatpush.msra.mxu0 0.0
  %650 = vmatpush.msra.mxu0 0.0
  %651 = vmatpush.msra.mxu0 0.0
  %652 = vmatpush.msra.mxu0 %v549
  %653 = vmatpush.msra.mxu0 %v547
  %654 = vmatmul.f32.gmra.mxu0 %v159
  %v655 = vpop.f32.mrf.mxu0
  %v656 = vadd.f32 %v627, %v655
  %657 = vmatmul.f32.gmra.mxu0 %v162
  %v658 = vpop.f32.mrf.mxu0
  %v659 = vadd.f32 %v630, %v658
  %660 = vmatmul.f32.gmra.mxu0 %v165
  %v661 = vpop.f32.mrf.mxu0
  %v662 = vadd.f32 %v633, %v661
  %663 = vmatmul.f32.gmra.mxu0 %v168
  %v664 = vpop.f32.mrf.mxu0
  %v665 = vadd.f32 %v636, %v664
  %666 = vdwg.mxu0
  %667 = vmatpush.msra.mxu0 %v482
  %668 = vmatpush.msra.mxu0 %v480
  %669 = vmatpush.msra.mxu0 %v478
  %670 = vmatpush.msra.mxu0 %v476
  %671 = vmatpush.msra.mxu0 %v474
  %672 = vmatpush.msra.mxu0 %v472
  %673 = vmatpush.msra.mxu0 %v470
  %674 = vmatpush.msra.mxu0 %v468
  %675 = vmatpush.msra.mxu0 %v466
  %676 = vmatpush.msra.mxu0 %v464
  %677 = vmatpush.msra.mxu0 %v462
  %678 = vmatpush.msra.mxu0 %v460
  %679 = vmatpush.msra.mxu0 %v458
  %680 = vmatpush.msra.mxu0 %v456
  %681 = vmatpush.msra.mxu0 %v454
  %682 = vmatpush.msra.mxu0 %v452
  %683 = vmatmul.f32.gmra.mxu0 %v17
  %v684 = vpop.f32.mrf.mxu0
  %v685 = vadd.f32 %v140, %v684
  %686 = vmatmul.f32.gmra.mxu0 %v21
  %v687 = vpop.f32.mrf.mxu0
  %v688 = vadd.f32 %v145, %v687
  %689 = vmatmul.f32.gmra.mxu0 %v25
  %v690 = vpop.f32.mrf.mxu0
  %v691 = vadd.f32 %v150, %v690
  %692 = vmatmul.f32.gmra.mxu0 %v29
  %v693 = vpop.f32.mrf.mxu0
  %v694 = vadd.f32 %v155, %v693
  %695 = vdwg.mxu0
  %696 = vmatpush.msra.mxu0 %v514
  %697 = vmatpush.msra.mxu0 %v512
  %698 = vmatpush.msra.mxu0 %v510
  %699 = vmatpush.msra.mxu0 %v508
  %700 = vmatpush.msra.mxu0 %v506
  %701 = vmatpush.msra.mxu0 %v504
  %702 = vmatpush.msra.mxu0 %v502
  %703 = vmatpush.msra.mxu0 %v500
  %704 = vmatpush.msra.mxu0 %v498
  %705 = vmatpush.msra.mxu0 %v496
  %706 = vmatpush.msra.mxu0 %v494
  %707 = vmatpush.msra.mxu0 %v492
  %708 = vmatpush.msra.mxu0 %v490
  %709 = vmatpush.msra.mxu0 %v488
  %710 = vmatpush.msra.mxu0 %v486
  %711 = vmatpush.msra.mxu0 %v484
  %712 = vmatmul.f32.gmra.mxu0 %v18
  %v713 = vpop.f32.mrf.mxu0
  %v714 = vadd.f32 %v685, %v713
  %715 = vmatmul.f32.gmra.mxu0 %v22
  %v716 = vpop.f32.mrf.mxu0
  %v717 = vadd.f32 %v688, %v716
  %718 = vmatmul.f32.gmra.mxu0 %v26
  %v719 = vpop.f32.mrf.mxu0
  %v720 = vadd.f32 %v691, %v719
  %721 = vmatmul.f32.gmra.mxu0 %v30
  %v722 = vpop.f32.mrf.mxu0
  %v723 = vadd.f32 %v694, %v722
  %724 = vdwg.mxu0
  %725 = vmatpush.msra.mxu0 %v546
  %726 = vmatpush.msra.mxu0 %v544
  %727 = vmatpush.msra.mxu0 %v542
  %728 = vmatpush.msra.mxu0 %v540
  %729 = vmatpush.msra.mxu0 %v538
  %730 = vmatpush.msra.mxu0 %v536
  %731 = vmatpush.msra.mxu0 %v534
  %732 = vmatpush.msra.mxu0 %v532
  %733 = vmatpush.msra.mxu0 %v530
  %734 = vmatpush.msra.mxu0 %v528
  %735 = vmatpush.msra.mxu0 %v526
  %736 = vmatpush.msra.mxu0 %v524
  %737 = vmatpush.msra.mxu0 %v522
  %738 = vmatpush.msra.mxu0 %v520
  %739 = vmatpush.msra.mxu0 %v518
  %740 = vmatpush.msra.mxu0 %v516
  %741 = vmatmul.f32.gmra.mxu0 %v19
  %v742 = vpop.f32.mrf.mxu0
  %v743 = vadd.f32 %v714, %v742
  %744 = vmatmul.f32.gmra.mxu0 %v23
  %v745 = vpop.f32.mrf.mxu0
  %v746 = vadd.f32 %v717, %v745
  %747 = vmatmul.f32.gmra.mxu0 %v27
  %v748 = vpop.f32.mrf.mxu0
  %v749 = vadd.f32 %v720, %v748
  %750 = vmatmul.f32.gmra.mxu0 %v31
  %v751 = vpop.f32.mrf.mxu0
  %v752 = vadd.f32 %v723, %v751
  %753 = vdwg.mxu0
  %754 = vmatpush.msra.mxu0 0.0
  %755 = vmatpush.msra.mxu0 0.0
  %756 = vmatpush.msra.mxu0 0.0
  %757 = vmatpush.msra.mxu0 0.0
  %758 = vmatpush.msra.mxu0 0.0
  %759 = vmatpush.msra.mxu0 0.0
  %760 = vmatpush.msra.mxu0 0.0
  %761 = vmatpush.msra.mxu0 0.0
  %762 = vmatpush.msra.mxu0 0.0
  %763 = vmatpush.msra.mxu0 0.0
  %764 = vmatpush.msra.mxu0 0.0
  %765 = vmatpush.msra.mxu0 0.0
  %766 = vmatpush.msra.mxu0 0.0
  %767 = vmatpush.msra.mxu0 0.0
  %768 = vmatpush.msra.mxu0 %v550
  %769 = vmatpush.msra.mxu0 %v548
  %770 = vmatmul.f32.gmra.mxu0 %v159
  %v771 = vpop.f32.mrf.mxu0
  %v772 = vadd.f32 %v743, %v771
  %773 = vmatmul.f32.gmra.mxu0 %v162
  %v774 = vpop.f32.mrf.mxu0
  %v775 = vadd.f32 %v746, %v774
  %776 = vmatmul.f32.gmra.mxu0 %v165
  %v777 = vpop.f32.mrf.mxu0
  %v778 = vadd.f32 %v749, %v777
  %779 = vmatmul.f32.gmra.mxu0 %v168
  %v780 = vpop.f32.mrf.mxu0
  %v781 = vadd.f32 %v752, %v780
  %782 = vdwg.mxu0
  %v783 = vpack.c.bf16 %v772, %v656
  %v784 = vpack.c.bf16 %v775, %v659
  %v785 = vpack.c.bf16 %v778, %v662
  %v786 = vpack.c.bf16 %v781, %v665
  %s787 = scalar_lea.vmem %s3, 32
  %788 = vst [vmem:[%s787] sm:$0xff] %v783
  %789 = vst [vmem:[%s787 + $0x8] sm:$0xff] %v784
  %790 = vst [vmem:[%s787 + $0x10] sm:$0xff] %v785
  %791 = vst [vmem:[%s787 + $0x18] sm:$0xff] %v786
  %v792 = vadd.f32 %v656, %v772
  %793 = vadd.xlane.f32.xlu0 %v792
  %v794 = vpop.xlane.xlu0 %793
  %v795 = vadd.f32 %v659, %v775
  %796 = vadd.xlane.f32.xlu0 %v795
  %v797 = vpop.xlane.xlu0 %796
  %v798 = vadd.f32 %v662, %v778
  %799 = vadd.xlane.f32.xlu0 %v798
  %v800 = vpop.xlane.xlu0 %799
  %v801 = vadd.f32 %v665, %v781
  %802 = vadd.xlane.f32.xlu0 %v801
  %v803 = vpop.xlane.xlu0 %802
  %v804 = vadd.f32 %v422, %v794
  %v805 = vadd.f32 %v423, %v797
  %v806 = vadd.f32 %v424, %v800
  %v807 = vadd.f32 %v425, %v803
  %v808 = vmul.f32 %v656, %v656
  %v809 = vmul.f32 %v772, %v772
  %v810 = vmul.f32 %v659, %v659
  %v811 = vmul.f32 %v775, %v775
  %v812 = vmul.f32 %v662, %v662
  %v813 = vmul.f32 %v778, %v778
  %v814 = vmul.f32 %v665, %v665
  %v815 = vmul.f32 %v781, %v781
  %v816 = vadd.f32 %v808, %v809
  %817 = vadd.xlane.f32.xlu0 %v816
  %v818 = vpop.xlane.xlu0 %817
  %v819 = vadd.f32 %v810, %v811
  %820 = vadd.xlane.f32.xlu0 %v819
  %v821 = vpop.xlane.xlu0 %820
  %v822 = vadd.f32 %v812, %v813
  %823 = vadd.xlane.f32.xlu0 %v822
  %v824 = vpop.xlane.xlu0 %823
  %v825 = vadd.f32 %v814, %v815
  %826 = vadd.xlane.f32.xlu0 %v825
  %v827 = vpop.xlane.xlu0 %826
  %v828 = vadd.f32 %v446, %v818
  %v829 = vadd.f32 %v447, %v821
  %v830 = vadd.f32 %v448, %v824
  %v831 = vadd.f32 %v449, %v827
  %vm832 = vcmask 7168
  %833 = vst.msk [vmem:[%s4] sm:$0xff] %vm832, %v804
  %834 = vst.msk [vmem:[%s4 + $0x8] sm:$0xff] %vm832, %v805
  %835 = vst.msk [vmem:[%s4 + $0x10] sm:$0xff] %vm832, %v806
  %836 = vst.msk [vmem:[%s4 + $0x18] sm:$0xff] %vm832, %v807
  %837 = vst.msk [vmem:[%s5] sm:$0xff] %vm832, %v828
  %838 = vst.msk [vmem:[%s5 + $0x8] sm:$0xff] %vm832, %v829
  %839 = vst.msk [vmem:[%s5 + $0x10] sm:$0xff] %vm832, %v830
  %840 = vst.msk [vmem:[%s5 + $0x18] sm:$0xff] %vm832, %v831
  // Predicated region
  $region14: #{resconv5.2} parent=0 // pred_check
    _
  $region15: #{resconv5.2} parent=0 // pred_check_branch
    %842 = sbr.rel (0) target = $region17
  $region16: #{resconv5.2} parent=0 // pred_region
    _
  $region17: #{resconv5.2} parent=0 // pred_fallthru
    _
  // Predicated region
  $region18: #{resconv5.2} parent=0 // pred_check
    _
  $region19: #{resconv5.2} parent=0 // pred_check_branch
    %844 = sbr.rel (0) target = $region21
  $region20: #{resconv5.2} parent=0 // pred_region
    _
  $region21: #{resconv5.2} parent=0 // pred_fallthru
    _
  // Predicated region
  $region22: #{resconv5.2} parent=0 // pred_check
    _
  $region23: #{resconv5.2} parent=0 // pred_check_branch
    %846 = sbr.rel (0) target = $region25
  $region24: #{resconv5.2} parent=0 // pred_region
    _
  $region25: #{resconv5.2} parent=0 // pred_fallthru
    _
  // Predicated region
  $region26: #{resconv5.2} parent=0 // pred_check
    _
  $region27: #{resconv5.2} parent=0 // pred_check_branch
    %848 = sbr.rel (0) target = $region29
  $region28: #{resconv5.2} parent=0 // pred_region
    _
  $region29: #{resconv5.2} parent=0 // pred_fallthru
    _
  // Predicated region
  $region30: #{resconv5.2} parent=0 // pred_check
    _
  $region31: #{resconv5.2} parent=0 // pred_check_branch
    %850 = sbr.rel (0) target = $region33
  $region32: #{resconv5.2} parent=0 // pred_region
    _
  $region33: #{resconv5.2} parent=0 // pred_fallthru
    _
  // Predicated region
  $region34: #{resconv5.2} parent=0 // pred_check
    _
  $region35: #{resconv5.2} parent=0 // pred_check_branch
    %852 = sbr.rel (0) target = $region37
  $region36: #{resconv5.2} parent=0 // pred_region
    _
  $region37: #{resconv5.2} parent=0 // pred_fallthru
    _

</llo_original>
